<compile_context>
chip_gen: v7x
topology: tpu7x:2x2x1
jax: 0.10.0
libtpu: 0.0.40
codegen_flags: <defaults>
</compile_context>

<pallas_src>
import functools

import jax
import jax.numpy as jnp
from jax.experimental import pallas as pl
from jax.experimental.pallas import tpu as pltpu

_LANE = 128


def _ffn_kernel(x_ref, w1_ref, b1_ref, w2_ref, b2_ref, o_ref, acc_ref):
    # x_ref:  (tm, E)   row tile (compute dtype)
    # w1_ref: (E, th)   column slab of w1
    # b1_ref: (1, th)   matching slab of b1 (f32)
    # w2_ref: (th, E)   row slab of w2
    # b2_ref: (1, E)    f32
    # o_ref:  (tm, E)   output tile (resident across the H axis)
    # acc_ref:(tm, E)   f32 accumulator scratch
    j = pl.program_id(1)

    # First matmul for this hidden slab; f32 accumulation on the MXU.
    h = jnp.dot(x_ref[...], w1_ref[...], preferred_element_type=jnp.float32)
    h = jnp.maximum(h + b1_ref[...].astype(jnp.float32), 0.0)  # bias + ReLU in f32

    # Second matmul: feed the MXU in the weights' native dtype.
    contrib = jnp.dot(
        h.astype(w2_ref.dtype), w2_ref[...], preferred_element_type=jnp.float32
    )

    # Direct assign on the first reduction step: saves a full-tile f32 zero
    # store + reload per row tile (relieves the vst slot, esp. on v5e).
    @pl.when(j == 0)
    def _():
        acc_ref[...] = contrib

    @pl.when(j > 0)
    def _():
        acc_ref[...] += contrib

    @pl.when(j == pl.num_programs(1) - 1)
    def _():
        out = acc_ref[...] + b2_ref[...].astype(jnp.float32)
        o_ref[...] = out.astype(o_ref.dtype)


def _largest_divisor_tile(dim, target, granule=_LANE):
    """Largest multiple of `granule` that divides `dim` and is <= target."""
    if dim <= target:
        return dim
    t = (target // granule) * granule
    while t >= granule:
        if dim % t == 0:
            return t
        t -= granule
    # Rare (dim not a multiple of 128): fall back to the full dimension.
    return dim


def _device_defaults():
    """Per-TPU-generation (tm, th, vmem_limit_bytes) defaults, best effort."""
    kind = ""
    try:
        kind = jax.devices()[0].device_kind.lower()
    except Exception:  # pragma: no cover - CPU / unknown backend fallback
        pass
    if "v7" in kind:
        # 64 MiB physical VMEM per TensorCore: do NOT carry the v6e config.
        return 512, 256, 48 * 1024 * 1024
    if "v6" in kind or "v5" in kind:
        # 128 MiB physical VMEM; tm~1024 pushes AI past the roofline crossover.
        return 1024, 512, 100 * 1024 * 1024
    # Unknown generation: conservative tiles that fit everywhere.
    return 512, 256, 48 * 1024 * 1024


@functools.partial(
    jax.jit,
    static_argnames=("tm", "th", "vmem_limit_bytes", "compute_dtype"),
)
def _feed_forward(x, w1, b1, w2, b2, *, tm, th, vmem_limit_bytes, compute_dtype):
    B, S, E = x.shape
    H = w1.shape[1]
    M = B * S
    out_dtype = x.dtype

    # bf16-by-default MXU inputs (f32 accumulate inside the kernel); biases
    # stay f32 — they are tiny and added in f32 anyway.
    if compute_dtype is not None:
        x = x.astype(compute_dtype)
        w1 = w1.astype(compute_dtype)
        w2 = w2.astype(compute_dtype)
    b1 = b1.reshape(1, H).astype(jnp.float32)
    b2 = b2.reshape(1, E).astype(jnp.float32)

    x2 = x.reshape(M, E)
    cbytes = jnp.dtype(x2.dtype).itemsize
    obytes = jnp.dtype(out_dtype).itemsize

    # ---- tile selection -----------------------------------------------------
    # Hidden tile: largest multiple of 128 that divides H (bounds per-step
    # weight-slab size for real FFN widths instead of pulling all of w1/w2).
    th = _largest_divisor_tile(H, th)

    # Row tile: the arithmetic-intensity lever.
    if tm >= M:
        if M >= 512:
            # Keep >=2 row tiles so the second TensorCore (v7x megacore) is
            # not idle; round up to a multiple of 256 to fill the MXU.
            tm = max(256, ((pl.cdiv(M, 2) + 255) // 256) * 256)
        else:
            tm = M  # tiny problem: one full-extent row tile

    # VMEM budget guard: shrink th first (keeps AI, which only depends on tm),
    # then tm. Estimate includes double-buffered ins/outs, f32 accumulator and
    # live f32 intermediates.
    def vmem_estimate(tm_, th_):
        return (
            2 * (tm_ * E + 2 * E * th_ + th_ + E) * cbytes  # x, w1, w2, b1, b2 (x2 bufs)
            + 2 * tm_ * E * obytes                          # out (x2 bufs)
            + tm_ * E * 4                                   # f32 accumulator scratch
            + tm_ * (th_ + E) * 4                           # live f32 h / contrib
        )

    while vmem_estimate(tm, th) > 0.85 * vmem_limit_bytes:
        if th > _LANE and H % (th // 2) == 0:
            th //= 2
        elif tm > 256:
            tm = max(256, tm // 2)
        else:
            break

    grid = (pl.cdiv(M, tm), H // th)

    # ---- cost estimate (account for weight re-streaming) --------------------
    num_row_tiles = grid[0]
    wbytes = jnp.dtype(w1.dtype).itemsize
    cost = pl.CostEstimate(
        flops=4 * M * E * H,  # two matmuls, 2*M*E*H each
        transcendentals=0,
        bytes_accessed=(
            M * E * cbytes                                          # x read
            + num_row_tiles * (w1.size + w2.size) * wbytes          # weights, re-streamed
            + num_row_tiles * (b1.size + b2.size) * 4               # biases
            + M * E * obytes                                        # out write
        ),
    )

    out = pl.pallas_call(
        _ffn_kernel,
        out_shape=jax.ShapeDtypeStruct((M, E), out_dtype),
        grid_spec=pltpu.PrefetchScalarGridSpec(
            num_scalar_prefetch=0,
            grid=grid,
            in_specs=[
                pl.BlockSpec((tm, E), lambda i, j: (i, 0)),   # x row tile
                pl.BlockSpec((E, th), lambda i, j: (0, j)),   # w1 column slab
                pl.BlockSpec((1, th), lambda i, j: (0, j)),   # b1 slab
                pl.BlockSpec((th, E), lambda i, j: (j, 0)),   # w2 row slab
                pl.BlockSpec((1, E), lambda i, j: (0, 0)),    # b2 (finalize only)
            ],
            # Same output block across j => the output/accumulator stays
            # resident across the reduction axis; written back once per tile.
            out_specs=pl.BlockSpec((tm, E), lambda i, j: (i, 0)),
            scratch_shapes=[pltpu.VMEM((tm, E), jnp.float32)],
        ),
        compiler_params=pltpu.CompilerParams(
            dimension_semantics=("parallel", "arbitrary"),
            vmem_limit_bytes=vmem_limit_bytes,
        ),
        cost_estimate=cost,
    )(x2, w1, b1, w2, b2)
    return out.reshape(B, S, E)


def feed_forward(x, w1, b1, w2, b2, *, tm=None, th=None, vmem_limit_bytes=None,
                 compute_dtype=jnp.bfloat16):
    """x: (B, S, E). w1: (E, H), b1: (1, H), w2: (H, E), b2: (1, E)."""
    d_tm, d_th, d_vmem = _device_defaults()
    tm = d_tm if tm is None else tm
    th = d_th if th is None else th
    vmem_limit_bytes = d_vmem if vmem_limit_bytes is None else vmem_limit_bytes
    return _feed_forward(
        x, w1, b1, w2, b2,
        tm=tm, th=th, vmem_limit_bytes=vmem_limit_bytes,
        compute_dtype=compute_dtype,
    )


def init_params(key, embedding_dim):
    """Deterministic init mirroring nn.Linear shapes (weights pre-transposed)."""
    hidden_dim = 4 * embedding_dim
    k1, k2, k3, k4 = jax.random.split(key, 4)
    # PyTorch nn.Linear uses U(-1/sqrt(fan_in), 1/sqrt(fan_in)); replicate scale.
    s1 = 1.0 / jnp.sqrt(embedding_dim)
    s2 = 1.0 / jnp.sqrt(hidden_dim)
    w1 = jax.random.uniform(k1, (embedding_dim, hidden_dim), jnp.float32, -s1, s1)
    b1 = jax.random.uniform(k2, (1, hidden_dim), jnp.float32, -s1, s1)
    w2 = jax.random.uniform(k3, (hidden_dim, embedding_dim), jnp.float32, -s2, s2)
    b2 = jax.random.uniform(k4, (1, embedding_dim), jnp.float32, -s2, s2)
    return w1, b1, w2, b2


if __name__ == "__main__":
    key = jax.random.PRNGKey(0)
    batch, seq, embedding_dim = 2, 8, 32  # toy smoke-test shape

    kx, kp = jax.random.split(key)
    x = jax.random.normal(kx, (batch, seq, embedding_dim), jnp.float32)
    w1, b1, w2, b2 = init_params(kp, embedding_dim)

    E = embedding_dim

    # Default (recommended) bf16 compute path.
    out = jax.block_until_ready(feed_forward(x, w1, b1, w2, b2))

    # Reference with the same bf16 input rounding, f32 accumulation.
    xb = x.reshape(-1, E).astype(jnp.bfloat16).astype(jnp.float32)
    w1b = w1.astype(jnp.bfloat16).astype(jnp.float32)
    w2b = w2.astype(jnp.bfloat16).astype(jnp.float32)
    h = jnp.maximum(
        jax.lax.dot(xb, w1b, precision=jax.lax.Precision.HIGHEST) + b1, 0.0)
    hb = h.astype(jnp.bfloat16).astype(jnp.float32)
    ref = (jax.lax.dot(hb, w2b, precision=jax.lax.Precision.HIGHEST) + b2
           ).reshape(batch, seq, E)

    assert out.shape == (batch, seq, E)
    assert out.dtype == x.dtype
    assert jnp.allclose(out, ref, atol=2e-3, rtol=2e-3)

    # Native-f32 path (compute_dtype=None) also compiles and runs; loose check.
    out_f32 = jax.block_until_ready(
        feed_forward(x, w1, b1, w2, b2, compute_dtype=None))
    h32 = jnp.maximum(
        jax.lax.dot(x.reshape(-1, E), w1,
                    precision=jax.lax.Precision.HIGHEST) + b1, 0.0)
    ref_f32 = (jax.lax.dot(h32, w2, precision=jax.lax.Precision.HIGHEST) + b2
               ).reshape(batch, seq, E)
    assert jnp.allclose(out_f32, ref_f32, atol=5e-2, rtol=5e-2)

    print("KERNEL_OK")
</pallas_src>

<mosaic_0001>
module attributes {stable_mosaic.version = 11 : i64} {
  func.func @_ffn_kernel(%arg0: i32, %arg1: i32, %arg2: memref<16x32xbf16, #tpu.memory_space<vmem>>, %arg3: memref<32x128xbf16, #tpu.memory_space<vmem>>, %arg4: memref<1x128xf32, #tpu.memory_space<vmem>>, %arg5: memref<128x32xbf16, #tpu.memory_space<vmem>>, %arg6: memref<1x32xf32, #tpu.memory_space<vmem>>, %arg7: memref<16x32xf32, #tpu.memory_space<vmem>>, %arg8: memref<16x32xf32, #tpu.memory_space<vmem>>) attributes {dimension_semantics = [#tpu.dimension_semantics<parallel>, #tpu.dimension_semantics<arbitrary>], iteration_bounds = array<i64: 1, 1>, scalar_prefetch = 0 : i64, scratch_operands = 1 : i64, tpu.core_type = #tpu.core_type<tc>, window_params = [{transform_indices = @transform_0, window_bounds = array<i64: 16, 32>}, {transform_indices = @transform_1, window_bounds = array<i64: 32, 128>}, {transform_indices = @transform_2, window_bounds = array<i64: 1, 128>}, {transform_indices = @transform_3, window_bounds = array<i64: 128, 32>}, {pipeline_mode = #tpu.pipeline_mode<synchronous>, transform_indices = @transform_4, window_bounds = array<i64: 1, 32>}, {transform_indices = @transform_5, window_bounds = array<i64: 16, 32>}]} {
    %c0 = arith.constant 0 : index
    %c0_0 = arith.constant 0 : index
    %0 = vector.load %arg2[%c0, %c0_0] : memref<16x32xbf16, #tpu.memory_space<vmem>>, vector<16x32xbf16>
    %c0_1 = arith.constant 0 : index
    %c0_2 = arith.constant 0 : index
    %1 = vector.load %arg3[%c0_1, %c0_2] : memref<32x128xbf16, #tpu.memory_space<vmem>>, vector<32x128xbf16>
    %cst = arith.constant dense<0.000000e+00> : vector<16x128xf32>
    %2 = tpu.matmul %0, %1, %cst {dimension_numbers = #tpu.dot_dimension_numbers<[1], [0], [0], [1], [0, 0, 1, 1], [], []>} : vector<16x32xbf16>, vector<32x128xbf16>, vector<16x128xf32> -> vector<16x128xf32>
    %c0_3 = arith.constant 0 : index
    %c0_4 = arith.constant 0 : index
    %3 = vector.load %arg4[%c0_3, %c0_4] : memref<1x128xf32, #tpu.memory_space<vmem>>, vector<1x128xf32>
    %4 = vector.broadcast %3 : vector<1x128xf32> to vector<16x128xf32>
    %5 = arith.addf %2, %4 : vector<16x128xf32>
    %cst_5 = arith.constant 0.000000e+00 : f32
    %6 = vector.broadcast %cst_5 : f32 to vector<16x128xf32>
    %7 = arith.maximumf %5, %6 : vector<16x128xf32>
    %8 = arith.truncf %7 : vector<16x128xf32> to vector<16x128xbf16>
    %c0_6 = arith.constant 0 : index
    %c0_7 = arith.constant 0 : index
    %9 = vector.load %arg5[%c0_6, %c0_7] : memref<128x32xbf16, #tpu.memory_space<vmem>>, vector<128x32xbf16>
    %cst_8 = arith.constant dense<0.000000e+00> : vector<16x32xf32>
    %10 = tpu.matmul %8, %9, %cst_8 {dimension_numbers = #tpu.dot_dimension_numbers<[1], [0], [0], [1], [0, 0, 1, 1], [], []>} : vector<16x128xbf16>, vector<128x32xbf16>, vector<16x32xf32> -> vector<16x32xf32>
    %c0_i32 = arith.constant 0 : i32
    %11 = arith.cmpi eq, %arg1, %c0_i32 : i32
    %12 = arith.extui %11 : i1 to i32
    %c0_i32_9 = arith.constant 0 : i32
    %13 = arith.cmpi ne, %12, %c0_i32_9 : i32
    scf.if %13 {
      %c0_14 = arith.constant 0 : index
      %c0_15 = arith.constant 0 : index
      %20 = vector.load %arg8[%c0_14, %c0_15] : memref<16x32xf32, #tpu.memory_space<vmem>>, vector<16x32xf32>
      tpu.vector_store %arg8[%c0_14, %c0_15], %10 {strides = array<i32>} : memref<16x32xf32, #tpu.memory_space<vmem>>, vector<16x32xf32>,
    } else {
    }
    %c0_i32_10 = arith.constant 0 : i32
    %14 = arith.cmpi sgt, %arg1, %c0_i32_10 : i32
    %15 = arith.extui %14 : i1 to i32
    %c0_i32_11 = arith.constant 0 : i32
    %16 = arith.cmpi ne, %15, %c0_i32_11 : i32
    scf.if %16 {
      %c0_14 = arith.constant 0 : index
      %c0_15 = arith.constant 0 : index
      %20 = vector.load %arg8[%c0_14, %c0_15] : memref<16x32xf32, #tpu.memory_space<vmem>>, vector<16x32xf32>
      %21 = arith.addf %20, %10 : vector<16x32xf32>
      %c0_16 = arith.constant 0 : index
      %c0_17 = arith.constant 0 : index
      %22 = vector.load %arg8[%c0_16, %c0_17] : memref<16x32xf32, #tpu.memory_space<vmem>>, vector<16x32xf32>
      tpu.vector_store %arg8[%c0_16, %c0_17], %21 {strides = array<i32>} : memref<16x32xf32, #tpu.memory_space<vmem>>, vector<16x32xf32>,
    } else {
    }
    %c0_i32_12 = arith.constant 0 : i32
    %17 = arith.cmpi eq, %arg1, %c0_i32_12 : i32
    %18 = arith.extui %17 : i1 to i32
    %c0_i32_13 = arith.constant 0 : i32
    %19 = arith.cmpi ne, %18, %c0_i32_13 : i32
    scf.if %19 {
      %c0_14 = arith.constant 0 : index
      %c0_15 = arith.constant 0 : index
      %20 = vector.load %arg8[%c0_14, %c0_15] : memref<16x32xf32, #tpu.memory_space<vmem>>, vector<16x32xf32>
      %c0_16 = arith.constant 0 : index
      %c0_17 = arith.constant 0 : index
      %21 = vector.load %arg6[%c0_16, %c0_17] : memref<1x32xf32, #tpu.memory_space<vmem>>, vector<1x32xf32>
      %22 = vector.broadcast %21 : vector<1x32xf32> to vector<16x32xf32>
      %23 = arith.addf %20, %22 : vector<16x32xf32>
      %c0_18 = arith.constant 0 : index
      %c0_19 = arith.constant 0 : index
      %24 = vector.load %arg7[%c0_18, %c0_19] : memref<16x32xf32, #tpu.memory_space<vmem>>, vector<16x32xf32>
      tpu.vector_store %arg7[%c0_18, %c0_19], %23 {strides = array<i32>} : memref<16x32xf32, #tpu.memory_space<vmem>>, vector<16x32xf32>,
    } else {
    }
    return
  }
  func.func @transform_0(%arg0: i32, %arg1: i32) -> (i32, i32) {
    %c0_i32 = arith.constant 0 : i32
    %c0_i32_0 = arith.constant 0 : i32
    return %arg0, %c0_i32 : i32, i32
  }
  func.func @transform_1(%arg0: i32, %arg1: i32) -> (i32, i32) {
    %c0_i32 = arith.constant 0 : i32
    %c0_i32_0 = arith.constant 0 : i32
    return %c0_i32, %arg1 : i32, i32
  }
  func.func @transform_2(%arg0: i32, %arg1: i32) -> (i32, i32) {
    %c0_i32 = arith.constant 0 : i32
    %c0_i32_0 = arith.constant 0 : i32
    return %c0_i32, %arg1 : i32, i32
  }
  func.func @transform_3(%arg0: i32, %arg1: i32) -> (i32, i32) {
    %c0_i32 = arith.constant 0 : i32
    %c0_i32_0 = arith.constant 0 : i32
    return %arg1, %c0_i32 : i32, i32
  }
  func.func @transform_4(%arg0: i32, %arg1: i32) -> (i32, i32) {
    %c0_i32 = arith.constant 0 : i32
    %c0_i32_0 = arith.constant 0 : i32
    %c0_i32_1 = arith.constant 0 : i32
    return %c0_i32, %c0_i32_0 : i32, i32
  }
  func.func @transform_5(%arg0: i32, %arg1: i32) -> (i32, i32) {
    %c0_i32 = arith.constant 0 : i32
    %c0_i32_0 = arith.constant 0 : i32
    return %arg0, %c0_i32 : i32, i32
  }
}

</mosaic_0001>

<llo_original>
// kernel: _feed_forward.1
$region0: #{_feed_forward.1}
  #allocation0 [shape = 'u32[]', space=smem, size = 0x4, offset = 0x4, fixed_abs, tag = 'smem constant byte address 0x4 - core index']
  #allocation1 [shape = 'u32[144,128]{1,0:T(1,128)}', space=vmem, size = 0x12000, scoped, tag = 'internal scratch']
  #allocation2 [shape = 'f32[16,32]{1,0:T(8,128)}', space=vmem, size = 0x2000, scoped, tag = 'scratch operand']
  %s0 = inlined_call_operand.vmem [shape: bf16[16,32], index: 0, kind: input, shape index: {}]
  %s1 = inlined_call_operand.vmem [shape: bf16[32,128], index: 1, kind: input, shape index: {}]
  %s2 = inlined_call_operand.vmem [shape: f32[1,128], index: 2, kind: input, shape index: {}]
  %s3 = inlined_call_operand.vmem [shape: bf16[128,32], index: 3, kind: input, shape index: {}]
  %s4 = inlined_call_operand.vmem [shape: f32[1,32], index: 4, kind: input, shape index: {}]
  %s5 = inlined_call_operand.hbm [shape: f32[16,32], index: 5, kind: output, shape index: {}]
  %s6 = sld [smem:[#allocation0]]
  $region42: #{_feed_forward.1} parent=0
    _
  %s8 = ssub.s32 1, %s6
  %s9 = scalar_select 0, %s8, %s6
  $region1: #{_feed_forward.1} parent=0
    #allocation3 [shape = 'u8[8192]{0}', space=vmem, size = 0x2000, scoped, tag = 'output window, operand 0, single buffered']
    #allocation4 [shape = 's32[1]{0}', space=sflag, size = 0x4, scoped, tag = 'scoped memory for _feed_forward.1']
    %10 = vsyncpa [#allocation4], 0
    // Predicated region
    $region2: #{_feed_forward.1} parent=1 // pred_check
      _
    $region3: #{_feed_forward.1} parent=1 // pred_check_branch
      %12 = sbr.rel (0) target = $region5
    $region4: #{_feed_forward.1} parent=1 // pred_region
      _
    $region5: #{_feed_forward.1} parent=1 // pred_fallthru
      _
    // Predicated region
    $region6: #{_feed_forward.1} parent=1 // pred_check
      _
    $region7: #{_feed_forward.1} parent=1 // pred_check_branch
      %14 = sbr.rel (0) target = $region9
    $region8: #{_feed_forward.1} parent=1 // pred_region
      _
    $region9: #{_feed_forward.1} parent=1 // pred_fallthru
      _
    // Predicated region
    $region10: #{_feed_forward.1} parent=1 // pred_check
      _
    $region11: #{_feed_forward.1} parent=1 // pred_check_branch
      %16 = sbr.rel (0) target = $region13
    $region12: #{_feed_forward.1} parent=1 // pred_region
      _
    $region13: #{_feed_forward.1} parent=1 // pred_fallthru
      _
    // Predicated region
    $region14: #{_feed_forward.1} parent=1 // pred_check
      _
    $region15: #{_feed_forward.1} parent=1 // pred_check_branch
      %18 = sbr.rel (0) target = $region17
    $region16: #{_feed_forward.1} parent=1 // pred_region
      _
    $region17: #{_feed_forward.1} parent=1 // pred_fallthru
      _
    // Predicated region
    $region18: #{_feed_forward.1} parent=1 // pred_check
      _
    $region19: #{_feed_forward.1} parent=1 // pred_check_branch
      %20 = sbr.rel (0) target = $region21
    $region20: #{_feed_forward.1} parent=1 // pred_region
      _
    $region21: #{_feed_forward.1} parent=1 // pred_fallthru
      _
    %v22 = vld [vmem:[%s0] sm:$0xf]
    %v23 = vld [vmem:[%s0 + $0x4] sm:$0xf]
    %v24 = vld [vmem:[%s1] sm:$0xf]
    %v25 = vld [vmem:[%s1 + $0x4] sm:$0xf]
    %v26 = vld [vmem:[%s1 + $0x8] sm:$0xf]
    %v27 = vld [vmem:[%s1 + $0xc] sm:$0xf]
    %v28 = vld [vmem:[%s2] sm:$0x1]
    %v30 = vlaneseq
    %v31 = vshrl.u32 %v30, 7
    %v32 = vsub.s32 0, %v31
    %v33 = vrot.slane %v28, %v32
    %v37 = vunpack.c.l.b16 %v22
    %v38 = vunpack.c.l.b16 %v23
    %v39 = vpack.c.b16 %v38, %v37
    %v44 = vunpack.c.l.b16 %v24
    %v45 = vunpack.c.l.b16 %v25
    %v46 = vunpack.c.l.b16 %v26
    %v47 = vunpack.c.l.b16 %v27
    %v48 = vpack.c.b16 %v45, %v44
    %v49 = vpack.c.b16 %v47, %v46
    %vm52 = vcmask 261120
    %v54 = vsel %vm52, %v39, 0
    %56 = vmatprep.subr.bf16.mxu0 0
    %57 = vmatpush1.bf16.msra.mxu0 %v48
    %58 = vmatprep.subr.bf16.mxu0 0
    %59 = vmatpush1.bf16.msra.mxu0 %v49
    %60 = vmatprep.subr.bf16.mxu0 0
    %61 = vmatpush1.bf16.msra.mxu0 0
    %62 = vmatprep.subr.bf16.mxu0 0
    %63 = vmatpush1.bf16.msra.mxu0 0
    %64 = vmatprep.subr.bf16.mxu0 0
    %65 = vmatpush1.bf16.msra.mxu0 0
    %66 = vmatprep.subr.bf16.mxu0 0
    %67 = vmatpush1.bf16.msra.mxu0 0
    %68 = vmatprep.subr.bf16.mxu0 0
    %69 = vmatpush1.bf16.msra.mxu0 0
    %70 = vmatprep.subr.bf16.mxu0 0
    %71 = vmatpush1.bf16.msra.mxu0 0
    %72 = vmatprep.subr.bf16.mxu0 0
    %73 = vmatpush1.bf16.msra.mxu0 0
    %74 = vmatprep.subr.bf16.mxu0 0
    %75 = vmatpush1.bf16.msra.mxu0 0
    %76 = vmatprep.subr.bf16.mxu0 0
    %77 = vmatpush1.bf16.msra.mxu0 0
    %78 = vmatprep.subr.bf16.mxu0 0
    %79 = vmatpush1.bf16.msra.mxu0 0
    %80 = vmatprep.subr.bf16.mxu0 0
    %81 = vmatpush1.bf16.msra.mxu0 0
    %82 = vmatprep.subr.bf16.mxu0 0
    %83 = vmatpush1.bf16.msra.mxu0 0
    %84 = vmatprep.subr.bf16.mxu0 0
    %85 = vmatpush1.bf16.msra.mxu0 0
    %86 = vmatprep.subr.bf16.mxu0 0
    %87 = vmatpush1.bf16.msra.mxu0 0
    %88 = vmatprep.mubr.bf16.mxu0 0
    %89 = vmatmul.mubr.bf16.gmra.mrb[0].mxu0 %v54
    %v90 = vpop.f32.mrb[0].mxu0
    %v91 = vadd.f32 %v33, %v90
    %v92 = vpop.f32.mrb[0].mxu0
    %v93 = vpop.f32.mrb[0].mxu0
    %v94 = vadd.f32 %v33, %v93
    %v95 = vpop.f32.mrb[0].mxu0
    %96 = vdwg.mxu0
    %v97 = vmax.f32 %v91, 0.0
    %v98 = vmax.f32 %v94, 0.0
    %v99 = vpack.c.bf16 %v98, %v97
    %v100 = vld [vmem:[%s3] sm:$0xf]
    %v101 = vld [vmem:[%s3 + $0x4] sm:$0xf]
    %v102 = vld [vmem:[%s3 + $0x8] sm:$0xf]
    %v103 = vld [vmem:[%s3 + $0xc] sm:$0xf]
    %v104 = vld [vmem:[%s3 + $0x10] sm:$0xf]
    %v105 = vld [vmem:[%s3 + $0x14] sm:$0xf]
    %v106 = vld [vmem:[%s3 + $0x18] sm:$0xf]
    %v107 = vld [vmem:[%s3 + $0x1c] sm:$0xf]
    %v108 = vld [vmem:[%s3 + $0x20] sm:$0xf]
    %v109 = vld [vmem:[%s3 + $0x24] sm:$0xf]
    %v110 = vld [vmem:[%s3 + $0x28] sm:$0xf]
    %v111 = vld [vmem:[%s3 + $0x2c] sm:$0xf]
    %v112 = vld [vmem:[%s3 + $0x30] sm:$0xf]
    %v113 = vld [vmem:[%s3 + $0x34] sm:$0xf]
    %v114 = vld [vmem:[%s3 + $0x38] sm:$0xf]
    %v115 = vld [vmem:[%s3 + $0x3c] sm:$0xf]
    %v132 = vunpack.c.l.b16 %v100
    %v133 = vunpack.c.l.b16 %v101
    %v134 = vunpack.c.l.b16 %v102
    %v135 = vunpack.c.l.b16 %v103
    %v136 = vunpack.c.l.b16 %v104
    %v137 = vunpack.c.l.b16 %v105
    %v138 = vunpack.c.l.b16 %v106
    %v139 = vunpack.c.l.b16 %v107
    %v140 = vunpack.c.l.b16 %v108
    %v141 = vunpack.c.l.b16 %v109
    %v142 = vunpack.c.l.b16 %v110
    %v143 = vunpack.c.l.b16 %v111
    %v144 = vunpack.c.l.b16 %v112
    %v145 = vunpack.c.l.b16 %v113
    %v146 = vunpack.c.l.b16 %v114
    %v147 = vunpack.c.l.b16 %v115
    %v148 = vpack.c.b16 %v133, %v132
    %v149 = vpack.c.b16 %v135, %v134
    %v150 = vpack.c.b16 %v137, %v136
    %v151 = vpack.c.b16 %v139, %v138
    %v152 = vpack.c.b16 %v141, %v140
    %v153 = vpack.c.b16 %v143, %v142
    %v154 = vpack.c.b16 %v145, %v144
    %v155 = vpack.c.b16 %v147, %v146
    %164 = vmatprep.subr.bf16.mxu0 0
    %165 = vmatpush1.bf16.msra.mxu0 %v148
    %166 = vmatprep.subr.bf16.mxu0 0
    %167 = vmatpush1.bf16.msra.mxu0 %v149
    %168 = vmatprep.subr.bf16.mxu0 0
    %169 = vmatpush1.bf16.msra.mxu0 %v150
    %170 = vmatprep.subr.bf16.mxu0 0
    %171 = vmatpush1.bf16.msra.mxu0 %v151
    %172 = vmatprep.subr.bf16.mxu0 0
    %173 = vmatpush1.bf16.msra.mxu0 %v152
    %174 = vmatprep.subr.bf16.mxu0 0
    %175 = vmatpush1.bf16.msra.mxu0 %v153
    %176 = vmatprep.subr.bf16.mxu0 0
    %177 = vmatpush1.bf16.msra.mxu0 %v154
    %178 = vmatprep.subr.bf16.mxu0 0
    %179 = vmatpush1.bf16.msra.mxu0 %v155
    %180 = vmatprep.subr.bf16.mxu0 0
    %181 = vmatpush1.bf16.msra.mxu0 0
    %182 = vmatprep.subr.bf16.mxu0 0
    %183 = vmatpush1.bf16.msra.mxu0 0
    %184 = vmatprep.subr.bf16.mxu0 0
    %185 = vmatpush1.bf16.msra.mxu0 0
    %186 = vmatprep.subr.bf16.mxu0 0
    %187 = vmatpush1.bf16.msra.mxu0 0
    %188 = vmatprep.subr.bf16.mxu0 0
    %189 = vmatpush1.bf16.msra.mxu0 0
    %190 = vmatprep.subr.bf16.mxu0 0
    %191 = vmatpush1.bf16.msra.mxu0 0
    %192 = vmatprep.subr.bf16.mxu0 0
    %193 = vmatpush1.bf16.msra.mxu0 0
    %194 = vmatprep.subr.bf16.mxu0 0
    %195 = vmatpush1.bf16.msra.mxu0 0
    %196 = vmatprep.mubr.bf16.mxu0 0
    %197 = vmatmul.mubr.bf16.gmra.mrb[0].mxu0 %v99
    %v198 = vpop.f32.mrb[0].mxu0
    %v199 = vadd.f32 0.0, %v198
    %v200 = vpop.f32.mrb[0].mxu0
    %v201 = vpop.f32.mrb[0].mxu0
    %v202 = vadd.f32 0.0, %v201
    %v203 = vpop.f32.mrb[0].mxu0
    %204 = vdwg.mxu0
    %p205 = scmp.eq.s32.totalorder 0, 0
    // Predicated region
    $region22: #{_feed_forward.1} parent=1 // pred_check
      %p206 = pneg %p205
    $region23: #{_feed_forward.1} parent=1 // pred_check_branch
      %208 = sbr.rel (%p206) target = $region25
    $region24: #{_feed_forward.1} parent=1 // pred_region
      %209 = vst.msk [vmem:[#allocation2] sm:$0xff] %vm52, %v199
      %210 = vst.msk [vmem:[#allocation2 + $0x8] sm:$0xff] %vm52, %v202
    $region25: #{_feed_forward.1} parent=1 // pred_fallthru
      _
    %p211 = scmp.gt.s32.totalorder 0, 0
    // Predicated region
    $region26: #{_feed_forward.1} parent=1 // pred_check
      %p212 = pneg %p211
    $region27: #{_feed_forward.1} parent=1 // pred_check_branch
      %214 = sbr.rel (%p212) target = $region29
    $region28: #{_feed_forward.1} parent=1 // pred_region
      %v215 = vld [vmem:[#allocation2] sm:$0xff]
      %v216 = vld [vmem:[#allocation2 + $0x8] sm:$0xff]
      %v217 = vadd.f32 %v215, %v199
      %v218 = vadd.f32 %v216, %v202
      %219 = vst.msk [vmem:[#allocation2] sm:$0xff] %vm52, %v217
      %220 = vst.msk [vmem:[#allocation2 + $0x8] sm:$0xff] %vm52, %v218
    $region29: #{_feed_forward.1} parent=1 // pred_fallthru
      _
    // Predicated region
    $region30: #{_feed_forward.1} parent=1 // pred_check
      %p221 = pneg %p205
    $region31: #{_feed_forward.1} parent=1 // pred_check_branch
      %223 = sbr.rel (%p221) target = $region33
    $region32: #{_feed_forward.1} parent=1 // pred_region
      %v224 = vld [vmem:[#allocation2] sm:$0xff]
      %v225 = vld [vmem:[#allocation2 + $0x8] sm:$0xff]
      %v226 = vld [vmem:[%s4] sm:$0x1]
      %v228 = vlaneseq
      %v229 = vshrl.u32 %v228, 7
      %v230 = vsub.s32 0, %v229
      %v231 = vrot.slane %v226, %v230
      %v233 = vadd.f32 %v224, %v231
      %v234 = vadd.f32 %v225, %v231
      %235 = vst.msk [vmem:[#allocation3] sm:$0xff] %vm52, %v233
      %236 = vst.msk [vmem:[#allocation3 + $0x8] sm:$0xff] %vm52, %v234
    $region33: #{_feed_forward.1} parent=1 // pred_fallthru
      _
    // Predicated region
    $region34: #{_feed_forward.1} parent=1 // pred_check
      _
    $region35: #{_feed_forward.1} parent=1 // pred_check_branch
      %238 = sbr.rel (0) target = $region37
    $region36: #{_feed_forward.1} parent=1 // pred_region
      %s240 = ssub.s32 256, 256
      %241 = vsyncadd [#allocation4], %s240
      %s242 = sshll.u32 [#allocation3], 4
      %s243 = int_to_ptr.vmem [resolvable:$true] %s242
      %248 = dma.vmem_to_hbm [thread:$0]  %s243, 256, %s5, [#allocation4], 128, 128, 8
    $region37: #{_feed_forward.1} parent=1 // pred_fallthru
      _
    // Predicated region
    $region38: #{_feed_forward.1} parent=1 // pred_check
      _
    $region39: #{_feed_forward.1} parent=1 // pred_check_branch
      %250 = sbr.rel (0) target = $region41
    $region40: #{_feed_forward.1} parent=1 // pred_region
      %251 = dma.done [#allocation4], 256
    $region41: #{_feed_forward.1} parent=1 // pred_fallthru
      _
    %252 = vsyncpa [#allocation4], 1

</llo_original>
